<compile_context>
chip_gen: v7x
topology: tpu7x:2x2x1
jax: 0.10.0
libtpu: 0.0.40
codegen_flags: <defaults>
</compile_context>

<pallas_src>
import jax
import jax.numpy as jnp
from jax.experimental import pallas as pl
from jax.experimental.pallas import tpu as pltpu


def _drop_path_kernel(scale_ref, x_ref, o_ref):
    # scale_ref: (TILE_N, 1) per-sample scale (0.0 or 1/keep_prob), in x dtype.
    # x_ref / o_ref: (TILE_N, TILE_F) lane-dense tile of the flattened input.
    o_ref[...] = x_ref[...] * scale_ref[...]


def _round_up(v, m):
    return (v + m - 1) // m * m


# Byte budget per live buffer (x tile == out tile).  2x double-buffered in +
# 2x out + tiny scale ~= 4 * budget, which stays under v5e's 16 MiB default
# scoped VMEM and comfortably inside v6e/v7x limits.
_BUDGET_BYTES = 2 * 1024 * 1024


def drop_path(x, rand, drop_prob: float = 0.0, training: bool = False):
    """Pallas implementation of timm's drop_path.

    x:    (N, ...) array (e.g. NCHW).
    rand: (N,) uniform[0,1) draws, one per sample (role of torch.rand((N,1,...,1))).
    """
    if drop_prob == 0.0 or not training:
        return x
    keep_prob = 1.0 - drop_prob

    orig_shape = x.shape
    N = orig_shape[0]
    F = 1
    for d in orig_shape[1:]:
        F *= d

    # Per-sample scale = floor(keep_prob + U) / keep_prob, computed once in the
    # wrapper ((N,)-sized, negligible) and already cast to x.dtype so the
    # kernel has no scalar math and no per-tile cast.
    scale = (jnp.floor(keep_prob + rand.astype(jnp.float32))
             / jnp.float32(keep_prob)).astype(x.dtype).reshape(N, 1)

    # Lane-dense flattened view; contiguous reshape, no data movement, no pad.
    x_flat = x.reshape(N, F)

    itemsize = jnp.dtype(x.dtype).itemsize
    sub = max(8, 32 // itemsize)            # sublane packing: 8 f32 / 16 bf16 / 32 int8

    # Feature tile: multiple of 128 lanes, capped so that `sub` rows of it
    # still fit the byte budget.  The last grid-j block may be ragged; Pallas
    # clips its writes, so no pre-pad / post-slice passes are needed.
    lane_cap = max(128, (_BUDGET_BYTES // (sub * itemsize)) // 128 * 128)
    TILE_F = min(_round_up(F, 128), lane_cap)

    # Sample tile: fill the remaining byte budget with rows, aligned to the
    # dtype packing granularity (full N when the batch is tiny).
    if N <= sub:
        TILE_N = N
    else:
        rows = max(sub, (_BUDGET_BYTES // (TILE_F * itemsize)) // sub * sub)
        TILE_N = min(_round_up(N, sub), rows)

    grid = (pl.cdiv(N, TILE_N), pl.cdiv(F, TILE_F))

    out_flat = pl.pallas_call(
        _drop_path_kernel,
        out_shape=jax.ShapeDtypeStruct((N, F), x.dtype),
        grid_spec=pltpu.PrefetchScalarGridSpec(
            num_scalar_prefetch=0,
            grid=grid,
            in_specs=[
                pl.BlockSpec((TILE_N, 1), lambda i, j: (i, 0)),        # per-row scale
                pl.BlockSpec((TILE_N, TILE_F), lambda i, j: (i, j)),   # x tile
            ],
            out_specs=pl.BlockSpec((TILE_N, TILE_F), lambda i, j: (i, j)),
        ),
        compiler_params=pltpu.CompilerParams(
            dimension_semantics=("parallel", "parallel"),
        ),
    )(scale, x_flat)

    return out_flat.reshape(orig_shape)


class DropPath:
    """Stateless JAX/Pallas counterpart of the PyTorch DropPath module."""

    def __init__(self, drop_prob=None):
        self.drop_prob = drop_prob
        self.training = True

    def __call__(self, x, rand):
        p = 0.0 if self.drop_prob is None else self.drop_prob
        return drop_path(x, rand, p, self.training)


if __name__ == "__main__":
    key = jax.random.PRNGKey(0)
    kx, kr, kx2, kr2 = jax.random.split(key, 4)

    drop_prob = 0.25
    keep_prob = 1.0 - drop_prob

    # Small NCHW input: batch=2, channels=4, spatial=16x16 (F = 1024 lanes).
    x = jax.random.normal(kx, (2, 4, 16, 16), dtype=jnp.float32)
    rand = jax.random.uniform(kr, (x.shape[0],), dtype=jnp.float32)

    module = DropPath(drop_prob)
    y = jax.block_until_ready(module(x, rand))

    mask = jnp.floor(keep_prob + rand).reshape(-1, 1, 1, 1)
    ref = x / keep_prob * mask
    assert y.shape == x.shape and y.dtype == x.dtype
    assert jnp.allclose(y, ref, atol=1e-5), "mismatch vs reference (aligned F)"

    # Ragged case: F = 5*7*9 = 315 (not a multiple of 128) exercises the
    # no-pad clipped last feature block.
    x2 = jax.random.normal(kx2, (3, 5, 7, 9), dtype=jnp.float32)
    rand2 = jax.random.uniform(kr2, (x2.shape[0],), dtype=jnp.float32)
    y2 = jax.block_until_ready(drop_path(x2, rand2, drop_prob, True))
    mask2 = jnp.floor(keep_prob + rand2).reshape(-1, 1, 1, 1)
    ref2 = x2 / keep_prob * mask2
    assert y2.shape == x2.shape and y2.dtype == x2.dtype
    assert jnp.allclose(y2, ref2, atol=1e-5), "mismatch vs reference (ragged F)"

    # Eval / drop_prob=0 path returns x untouched.
    module.training = False
    y_eval = jax.block_until_ready(module(x, rand))
    assert jnp.array_equal(y_eval, x)

    print("KERNEL_OK")
</pallas_src>

<mosaic_0001>
module attributes {stable_mosaic.version = 11 : i64} {
  func.func @_drop_path_kernel(%arg0: i32, %arg1: i32, %arg2: memref<2x1xf32, #tpu.memory_space<vmem>>, %arg3: memref<2x1024xf32, #tpu.memory_space<vmem>>, %arg4: memref<2x1024xf32, #tpu.memory_space<vmem>>) attributes {dimension_semantics = [#tpu.dimension_semantics<parallel>, #tpu.dimension_semantics<parallel>], iteration_bounds = array<i64: 1, 1>, scalar_prefetch = 0 : i64, scratch_operands = 0 : i64, tpu.core_type = #tpu.core_type<tc>, window_params = [{transform_indices = @transform_0, window_bounds = array<i64: 2, 1>}, {transform_indices = @transform_1, window_bounds = array<i64: 2, 1024>}, {transform_indices = @transform_2, window_bounds = array<i64: 2, 1024>}]} {
    %c0 = arith.constant 0 : index
    %c0_0 = arith.constant 0 : index
    %0 = vector.load %arg3[%c0, %c0_0] : memref<2x1024xf32, #tpu.memory_space<vmem>>, vector<2x1024xf32>
    %c0_1 = arith.constant 0 : index
    %c0_2 = arith.constant 0 : index
    %1 = vector.load %arg2[%c0_1, %c0_2] : memref<2x1xf32, #tpu.memory_space<vmem>>, vector<2x1xf32>
    %2 = vector.broadcast %1 : vector<2x1xf32> to vector<2x1024xf32>
    %3 = arith.mulf %0, %2 : vector<2x1024xf32>
    %c0_3 = arith.constant 0 : index
    %c0_4 = arith.constant 0 : index
    %4 = vector.load %arg4[%c0_3, %c0_4] : memref<2x1024xf32, #tpu.memory_space<vmem>>, vector<2x1024xf32>
    tpu.vector_store %arg4[%c0_3, %c0_4], %3 {strides = array<i32>} : memref<2x1024xf32, #tpu.memory_space<vmem>>, vector<2x1024xf32>,
    return
  }
  func.func @transform_0(%arg0: i32, %arg1: i32) -> (i32, i32) {
    %c0_i32 = arith.constant 0 : i32
    %c0_i32_0 = arith.constant 0 : i32
    return %arg0, %c0_i32 : i32, i32
  }
  func.func @transform_1(%arg0: i32, %arg1: i32) -> (i32, i32) {
    %c0_i32 = arith.constant 0 : i32
    return %arg0, %arg1 : i32, i32
  }
  func.func @transform_2(%arg0: i32, %arg1: i32) -> (i32, i32) {
    %c0_i32 = arith.constant 0 : i32
    return %arg0, %arg1 : i32, i32
  }
}

</mosaic_0001>

<llo_original>
// kernel: tpu_custom_call.1
$region0: #{tpu_custom_call.1}
  #allocation0 [shape = 'u32[]', space=smem, size = 0x4, offset = 0x4, fixed_abs, tag = 'smem constant byte address 0x4 - core index']
  #allocation1 [shape = 'u32[144,128]{1,0:T(1,128)}', space=vmem, size = 0x12000, scoped, tag = 'internal scratch']
  %s0 = inlined_call_operand.vmem [shape: f32[2,1], index: 0, kind: input, shape index: {}]
  %s1 = inlined_call_operand.hbm [shape: f32[2,1024], index: 1, kind: input, shape index: {}]
  %s2 = inlined_call_operand.hbm [shape: f32[2,1024], index: 2, kind: output, shape index: {}]
  %s3 = sld [smem:[#allocation0]]
  $region22: #{tpu_custom_call.1} parent=0
    _
  %s5 = ssub.s32 1, %s3
  %s6 = scalar_select 0, %s5, %s3
  $region1: #{tpu_custom_call.1} parent=0
    #allocation2 [shape = 'u8[8192]{0}', space=vmem, size = 0x2000, scoped, tag = 'input window, operand 1, single buffered']
    #allocation3 [shape = 's32[1]{0}', space=sflag, size = 0x4, scoped, tag = 'scoped memory for tpu_custom_call.1']
    #allocation4 [shape = 's32[1]{0}', space=sflag, size = 0x4, scoped, tag = 'scoped memory for tpu_custom_call.1']
    #allocation5 [shape = 'u8[8192]{0}', space=vmem, size = 0x2000, scoped, tag = 'output window, operand 0, single buffered']
    %7 = vsyncpa [#allocation3], 0
    %8 = vsyncpa [#allocation4], 0
    // Predicated region
    $region2: #{tpu_custom_call.1} parent=1 // pred_check
      _
    $region3: #{tpu_custom_call.1} parent=1 // pred_check_branch
      %10 = sbr.rel (0) target = $region5
    $region4: #{tpu_custom_call.1} parent=1 // pred_region
      _
    $region5: #{tpu_custom_call.1} parent=1 // pred_fallthru
      _
    // Predicated region
    $region6: #{tpu_custom_call.1} parent=1 // pred_check
      _
    $region7: #{tpu_custom_call.1} parent=1 // pred_check_branch
      %12 = sbr.rel (0) target = $region9
    $region8: #{tpu_custom_call.1} parent=1 // pred_region
      %s14 = ssub.s32 256, 256
      %15 = vsyncadd [#allocation3], %s14
      %s17 = sshll.u32 [#allocation2], 4
      %s18 = int_to_ptr.vmem [resolvable:$true] %s17
      %20 = dma.hbm_to_vmem [thread:$0]  %s1, 256, %s18, [#allocation3]
    $region9: #{tpu_custom_call.1} parent=1 // pred_fallthru
      _
    // Predicated region
    $region10: #{tpu_custom_call.1} parent=1 // pred_check
      _
    $region11: #{tpu_custom_call.1} parent=1 // pred_check_branch
      %22 = sbr.rel (0) target = $region13
    $region12: #{tpu_custom_call.1} parent=1 // pred_region
      %23 = dma.done [#allocation3], 256
    $region13: #{tpu_custom_call.1} parent=1 // pred_fallthru
      _
    %v24 = vld [vmem:[#allocation2] sm:$0xff]
    %v25 = vld [vmem:[#allocation2 + $0x8] sm:$0xff]
    %v26 = vld [vmem:[%s0] sm:$0x3]
    %28 = vset.pattern.permute.xlu0 0
    %29 = vperm.xlu0 %28, %v26
    %v30 = vpop.permute.xlu0 %29
    %v32 = vunpack.c.l.s4 269488144
    %v33 = vunpack.c.0.s8 %v32
    %v34 = vlaneseq
    %v35 = vshrl.u32 %v34, 7
    %v36 = vsub.s32 %v33, %v35
    %v37 = vrot.slane %v30, %v36
    %v39 = vmul.f32 %v24, %v37
    %v40 = vmul.f32 %v25, %v37
    %41 = vst [vmem:[#allocation5] sm:$0xff] %v39
    %42 = vst [vmem:[#allocation5 + $0x8] sm:$0xff] %v40
    // Predicated region
    $region14: #{tpu_custom_call.1} parent=1 // pred_check
      _
    $region15: #{tpu_custom_call.1} parent=1 // pred_check_branch
      %44 = sbr.rel (0) target = $region17
    $region16: #{tpu_custom_call.1} parent=1 // pred_region
      %s46 = ssub.s32 256, 256
      %47 = vsyncadd [#allocation4], %s46
      %s49 = sshll.u32 [#allocation5], 4
      %s50 = int_to_ptr.vmem [resolvable:$true] %s49
      %52 = dma.vmem_to_hbm [thread:$0]  %s50, 256, %s2, [#allocation4]
    $region17: #{tpu_custom_call.1} parent=1 // pred_fallthru
      _
    // Predicated region
    $region18: #{tpu_custom_call.1} parent=1 // pred_check
      _
    $region19: #{tpu_custom_call.1} parent=1 // pred_check_branch
      %54 = sbr.rel (0) target = $region21
    $region20: #{tpu_custom_call.1} parent=1 // pred_region
      %55 = dma.done [#allocation4], 256
    $region21: #{tpu_custom_call.1} parent=1 // pred_fallthru
      _
    %56 = vsyncpa [#allocation3], 1
    %57 = vsyncpa [#allocation4], 1

</llo_original>
